<compile_context>
chip_gen: v6e
topology: v6e:2x2x1
jax: 0.10.0
libtpu: 0.0.40
codegen_flags: <defaults>
</compile_context>

<pallas_src>
import functools

import jax
import jax.numpy as jnp
from jax import lax
from jax.experimental import pallas as pl
from jax.experimental.pallas import tpu as pltpu


def _cln_kernel(xr_ref, xi_ref, or_ref, oi_ref, *, eps, d_true):
    """LayerNorm each row of one (row_tile, Dp) tile over the lane axis."""
    xr = xr_ref[...]
    xi = xi_ref[...]
    inv_d = 1.0 / d_true

    # Pass 1: single traversal accumulating the three row statistics.
    # Lane reductions run on the XLU (free filler under the HBM-bound regime).
    sum_r = jnp.sum(xr, axis=-1, keepdims=True)
    sum_i = jnp.sum(xi, axis=-1, keepdims=True)
    sum_sq = jnp.sum(xr * xr + xi * xi, axis=-1, keepdims=True)

    mean_r = sum_r * inv_d
    mean_i = sum_i * inv_d
    # var = E[|x|^2] - |mean|^2 == E[|x - mean|^2]; clamp for FP round-off.
    var = jnp.maximum(sum_sq * inv_d - (mean_r * mean_r + mean_i * mean_i), 0.0)
    inv = lax.rsqrt(var + eps)  # EUP slot

    # Pass 2: (x - mean) * inv; the real scale applies to both planes.
    or_ref[...] = (xr - mean_r) * inv
    oi_ref[...] = (xi - mean_i) * inv


def _device_info():
    """Returns (physical VMEM bytes per core, chip has 2 TensorCores)."""
    kind = ""
    try:
        kind = jax.devices()[0].device_kind.lower()
    except Exception:
        pass
    two_tc = "v7" in kind
    phys = None
    try:
        phys = int(getattr(pltpu.get_tpu_info(), "vmem_capacity_bytes", 0)) or None
    except Exception:
        phys = None
    if phys is None:
        # Conservative fallbacks: 128 MiB on v4/v5/v6, 64 MiB otherwise (v7x).
        phys = (128 << 20) if any(g in kind for g in ("v4", "v5", "v6")) else (64 << 20)
    return phys, two_tc


def _pick_row_tile(R: int, Dp: int, vmem_limit: int, two_tc: bool) -> int:
    """Largest row tile that fits the (corrected) VMEM budget.

    Live pipeline memory = (2 inputs + 2 outputs) * double-buffer * f32
    = 32 * row_tile * Dp bytes.  Leave ~8 MiB headroom under the scoped limit
    for Mosaic internal scratch.
    """
    if R <= 8:
        return R
    budget = max(1 << 20, vmem_limit - (8 << 20))
    t = min(8192, max(8, budget // (32 * Dp)))
    if two_tc:
        # v7x only (2 TCs): keep >= ~4 grid steps so the "parallel" axis can
        # shard across TensorCores, but never drop below ~2 MiB of HBM traffic
        # per step (per-step traffic = 16 * row_tile * Dp bytes).
        min_rows = max(8, (2 << 20) // (16 * Dp))
        t = min(t, max(-(-R // 4), min_rows))
    if t >= R:
        return R  # single full-extent block (allowed even if R % 8 != 0)
    return max(8, (t // 8) * 8)


@functools.partial(jax.jit, static_argnames=("eps", "row_tile"))
def complex_layer_norm(x: jax.Array, eps: float = 1e-5, *, row_tile: int | None = None) -> jax.Array:
    """x: complex array [..., D]; returns complex64 of the same shape.

    Note: complex128 inputs are computed in float32 / returned as complex64.
    """
    orig_shape = x.shape
    D = orig_shape[-1]

    # Planar f32 representation (Mosaic has no complex refs).  Under jit the
    # real/imag extraction fuses into one multi-output pass over x.
    xr = jnp.real(x).astype(jnp.float32).reshape(-1, D)
    xi = jnp.imag(x).astype(jnp.float32).reshape(-1, D)
    R = xr.shape[0]

    # Lane density: zero-pad D to a multiple of 128 so stores are unmasked.
    # Padded zeros don't change the sums; the kernel divides by the true D.
    Dp = ((D + 127) // 128) * 128
    if Dp != D:
        xr = jnp.pad(xr, ((0, 0), (0, Dp - D)))
        xi = jnp.pad(xi, ((0, 0), (0, Dp - D)))

    vmem_phys, two_tc = _device_info()
    vmem_limit = min((vmem_phys * 3) // 4, 96 << 20)  # ~96 MiB v5e/v6e, 48 MiB v7x
    if row_tile is None:
        row_tile = _pick_row_tile(R, Dp, vmem_limit, two_tc)

    # No row padding: cdiv grid + Pallas partial-last-block handling.  The
    # ragged tail block reads unspecified rows, but rows are independent and
    # the OOB output writes are dropped, so this is safe (NO cross-row
    # reductions may ever be added to the kernel).
    num_tiles = pl.cdiv(R, row_tile)
    spec = pl.BlockSpec((row_tile, Dp), lambda i: (i, 0))
    kernel = functools.partial(_cln_kernel, eps=float(eps), d_true=float(D))

    out_r, out_i = pl.pallas_call(
        kernel,
        out_shape=(
            jax.ShapeDtypeStruct((R, Dp), jnp.float32),
            jax.ShapeDtypeStruct((R, Dp), jnp.float32),
        ),
        grid_spec=pltpu.PrefetchScalarGridSpec(
            num_scalar_prefetch=0,
            grid=(num_tiles,),
            in_specs=[spec, spec],
            out_specs=(spec, spec),
        ),
        # input_output_aliases={0: 0, 1: 1} would drop one HBM allocation, but
        # outside a donating jit boundary XLA may insert a defensive copy (an
        # extra HBM pass), so it is intentionally left off.
        compiler_params=pltpu.CompilerParams(
            dimension_semantics=("parallel",),
            vmem_limit_bytes=int(vmem_limit),
        ),
    )(xr, xi)

    if Dp != D:
        out_r = out_r[:, :D]
        out_i = out_i[:, :D]
    # Under jit: slice + complex recombine + reshape fuse into one pass.
    return lax.complex(out_r, out_i).reshape(orig_shape).astype(jnp.complex64)


def _reference(x: jax.Array, eps: float = 1e-5) -> jax.Array:
    mean = jnp.mean(x, axis=-1, keepdims=True)
    s = x - mean
    var = jnp.mean(s * jnp.conj(s), axis=-1, keepdims=True)
    return (x - mean) / jnp.sqrt(var + eps)


if __name__ == "__main__":
    # Module has no learnable parameters (only eps).
    eps = 1e-5

    def make(shape, k):
        kr, ki = jax.random.split(k)
        return (jax.random.normal(kr, shape, dtype=jnp.float32)
                + 1j * jax.random.normal(ki, shape, dtype=jnp.float32)).astype(jnp.complex64)

    k1, k2, k3 = jax.random.split(jax.random.PRNGKey(0), 3)

    # Case 1: lane-dense, exactly-tiled (B, S, D) = (2, 8, 128).
    x1 = make((2, 8, 128), k1)
    o1 = jax.block_until_ready(complex_layer_norm(x1, eps=eps))
    r1 = _reference(x1, eps=eps)
    assert o1.shape == x1.shape and o1.dtype == jnp.complex64
    assert jnp.allclose(o1, r1, atol=1e-4, rtol=1e-4), "mismatch vs reference (case 1)"

    # Case 2: ragged row count with a forced multi-step grid (partial last
    # block, no row padding) -> exercises the OOB-drop path.
    x2 = make((3, 37, 128), k2)
    o2 = jax.block_until_ready(complex_layer_norm(x2, eps=eps, row_tile=16))
    r2 = _reference(x2, eps=eps)
    assert jnp.allclose(o2, r2, atol=1e-4, rtol=1e-4), "mismatch vs reference (case 2)"

    # Case 3: D not a multiple of 128 -> lane-padding path (Dp=128, d_true=96).
    x3 = make((4, 8, 96), k3)
    o3 = jax.block_until_ready(complex_layer_norm(x3, eps=eps))
    r3 = _reference(x3, eps=eps)
    assert jnp.allclose(o3, r3, atol=1e-4, rtol=1e-4), "mismatch vs reference (case 3)"

    print("KERNEL_OK")
</pallas_src>

<mosaic_0001>
module attributes {stable_mosaic.version = 11 : i64} {
  func.func @_cln_kernel(%arg0: i32, %arg1: memref<16x128xf32, #tpu.memory_space<vmem>>, %arg2: memref<16x128xf32, #tpu.memory_space<vmem>>, %arg3: memref<16x128xf32, #tpu.memory_space<vmem>>, %arg4: memref<16x128xf32, #tpu.memory_space<vmem>>) attributes {dimension_semantics = [#tpu.dimension_semantics<parallel>], iteration_bounds = array<i64: 1>, scalar_prefetch = 0 : i64, scratch_operands = 0 : i64, tpu.core_type = #tpu.core_type<tc>, window_params = [{transform_indices = @transform_0, window_bounds = array<i64: 16, 128>}, {transform_indices = @transform_1, window_bounds = array<i64: 16, 128>}, {transform_indices = @transform_2, window_bounds = array<i64: 16, 128>}, {transform_indices = @transform_3, window_bounds = array<i64: 16, 128>}]} {
    %c0 = arith.constant 0 : index
    %c0_0 = arith.constant 0 : index
    %0 = vector.load %arg1[%c0, %c0_0] : memref<16x128xf32, #tpu.memory_space<vmem>>, vector<16x128xf32>
    %c0_1 = arith.constant 0 : index
    %c0_2 = arith.constant 0 : index
    %1 = vector.load %arg2[%c0_1, %c0_2] : memref<16x128xf32, #tpu.memory_space<vmem>>, vector<16x128xf32>
    %cst = arith.constant dense<0.000000e+00> : vector<16xf32>
    %2 = vector.multi_reduction <add>, %0, %cst [1] : vector<16x128xf32> to vector<16xf32>
    %3 = vector.shape_cast %2 : vector<16xf32> to vector<16x1xf32>
    %cst_3 = arith.constant dense<0.000000e+00> : vector<16xf32>
    %4 = vector.multi_reduction <add>, %1, %cst_3 [1] : vector<16x128xf32> to vector<16xf32>
    %5 = vector.shape_cast %4 : vector<16xf32> to vector<16x1xf32>
    %6 = arith.mulf %0, %0 : vector<16x128xf32>
    %7 = arith.mulf %1, %1 : vector<16x128xf32>
    %8 = arith.addf %6, %7 : vector<16x128xf32>
    %cst_4 = arith.constant dense<0.000000e+00> : vector<16xf32>
    %9 = vector.multi_reduction <add>, %8, %cst_4 [1] : vector<16x128xf32> to vector<16xf32>
    %10 = vector.shape_cast %9 : vector<16xf32> to vector<16x1xf32>
    %cst_5 = arith.constant 7.812500e-03 : f32
    %11 = vector.broadcast %cst_5 : f32 to vector<16x1xf32>
    %12 = arith.mulf %3, %11 : vector<16x1xf32>
    %cst_6 = arith.constant 7.812500e-03 : f32
    %13 = vector.broadcast %cst_6 : f32 to vector<16x1xf32>
    %14 = arith.mulf %5, %13 : vector<16x1xf32>
    %cst_7 = arith.constant 7.812500e-03 : f32
    %15 = vector.broadcast %cst_7 : f32 to vector<16x1xf32>
    %16 = arith.mulf %10, %15 : vector<16x1xf32>
    %17 = arith.mulf %12, %12 : vector<16x1xf32>
    %18 = arith.mulf %14, %14 : vector<16x1xf32>
    %19 = arith.addf %17, %18 : vector<16x1xf32>
    %20 = arith.subf %16, %19 : vector<16x1xf32>
    %cst_8 = arith.constant 0.000000e+00 : f32
    %21 = vector.broadcast %cst_8 : f32 to vector<16x1xf32>
    %22 = arith.maximumf %20, %21 : vector<16x1xf32>
    %cst_9 = arith.constant 9.99999974E-6 : f32
    %23 = vector.broadcast %cst_9 : f32 to vector<16x1xf32>
    %24 = arith.addf %22, %23 : vector<16x1xf32>
    %25 = math.rsqrt %24 : vector<16x1xf32>
    %26 = vector.broadcast %12 : vector<16x1xf32> to vector<16x128xf32>
    %27 = arith.subf %0, %26 : vector<16x128xf32>
    %28 = vector.broadcast %25 : vector<16x1xf32> to vector<16x128xf32>
    %29 = arith.mulf %27, %28 : vector<16x128xf32>
    %c0_10 = arith.constant 0 : index
    %c0_11 = arith.constant 0 : index
    %30 = vector.load %arg3[%c0_10, %c0_11] : memref<16x128xf32, #tpu.memory_space<vmem>>, vector<16x128xf32>
    tpu.vector_store %arg3[%c0_10, %c0_11], %29 {strides = array<i32>} : memref<16x128xf32, #tpu.memory_space<vmem>>, vector<16x128xf32>,
    %31 = vector.broadcast %14 : vector<16x1xf32> to vector<16x128xf32>
    %32 = arith.subf %1, %31 : vector<16x128xf32>
    %33 = vector.broadcast %25 : vector<16x1xf32> to vector<16x128xf32>
    %34 = arith.mulf %32, %33 : vector<16x128xf32>
    %c0_12 = arith.constant 0 : index
    %c0_13 = arith.constant 0 : index
    %35 = vector.load %arg4[%c0_12, %c0_13] : memref<16x128xf32, #tpu.memory_space<vmem>>, vector<16x128xf32>
    tpu.vector_store %arg4[%c0_12, %c0_13], %34 {strides = array<i32>} : memref<16x128xf32, #tpu.memory_space<vmem>>, vector<16x128xf32>,
    return
  }
  func.func @transform_0(%arg0: i32) -> (i32, i32) {
    %c0_i32 = arith.constant 0 : i32
    %c0_i32_0 = arith.constant 0 : i32
    return %arg0, %c0_i32 : i32, i32
  }
  func.func @transform_1(%arg0: i32) -> (i32, i32) {
    %c0_i32 = arith.constant 0 : i32
    %c0_i32_0 = arith.constant 0 : i32
    return %arg0, %c0_i32 : i32, i32
  }
  func.func @transform_2(%arg0: i32) -> (i32, i32) {
    %c0_i32 = arith.constant 0 : i32
    %c0_i32_0 = arith.constant 0 : i32
    return %arg0, %c0_i32 : i32, i32
  }
  func.func @transform_3(%arg0: i32) -> (i32, i32) {
    %c0_i32 = arith.constant 0 : i32
    %c0_i32_0 = arith.constant 0 : i32
    return %arg0, %c0_i32 : i32, i32
  }
}

</mosaic_0001>

<llo_original>
// kernel: custom-call.2
$region0: #{custom-call.2}
  %s0 = inlined_call_operand.vmem [shape: f32[2,8,128], index: 0, kind: input, shape index: {}]
  %s1 = inlined_call_operand.vmem [shape: f32[2,8,128], index: 1, kind: input, shape index: {}]
  %s2 = inlined_call_operand.hbm [shape: c64[2,8,128], index: 2, kind: output, shape index: {}]
  %s3 = scalar_lea.hbm %s2, 256
  $region1: #{custom-call.2} parent=0
    #allocation0 [shape = 's32[1]{0}', space=sflag, size = 0x4, scoped, tag = 'scoped memory for custom-call.2']
    %4 = vsyncpa [#allocation0], 0
    %s5 = sshll.u32 %s0, 4
    %s6 = int_to_ptr.vmem [resolvable:$true] %s5
    %8 = dma.vmem_to_hbm [thread:$0]  %s6, 256, %s2, [#allocation0]
    %9 = dma.done [#allocation0], 256
    %10 = vsyncpa [#allocation0], 1
  $region2: #{custom-call.2} parent=0
    #allocation1 [shape = 's32[1]{0}', space=sflag, size = 0x4, scoped, tag = 'scoped memory for custom-call.2']
    %11 = vsyncpa [#allocation1], 0
    %s12 = sshll.u32 %s1, 4
    %s13 = int_to_ptr.vmem [resolvable:$true] %s12
    %15 = dma.vmem_to_hbm [thread:$0]  %s13, 256, %s3, [#allocation1]
    %16 = dma.done [#allocation1], 256
    %17 = vsyncpa [#allocation1], 1

// kernel: custom-call
$region0: #{custom-call}
  %s0 = inlined_call_operand.hbm [shape: c64[2,8,128], index: 0, kind: input, shape index: {}]
  %s1 = inlined_call_operand.vmem [shape: f32[2,8,128], index: 1, kind: output, shape index: {}]
  $region1: #{custom-call} parent=0
    #allocation0 [shape = 's32[1]{0}', space=sflag, size = 0x4, scoped, tag = 'scoped memory for custom-call']
    %2 = vsyncpa [#allocation0], 0
    %s3 = sshll.u32 %s1, 4
    %s4 = int_to_ptr.vmem [resolvable:$true] %s3
    %6 = dma.hbm_to_vmem [thread:$0]  %s0, 256, %s4, [#allocation0]
    %7 = dma.done [#allocation0], 256
    %8 = vsyncpa [#allocation0], 1

// kernel: custom-call.1
$region0: #{custom-call.1}
  %s0 = inlined_call_operand.hbm [shape: c64[2,8,128], index: 0, kind: input, shape index: {}]
  %s1 = inlined_call_operand.vmem [shape: f32[2,8,128], index: 1, kind: output, shape index: {}]
  %s2 = scalar_lea.hbm %s0, 256
  $region1: #{custom-call.1} parent=0
    #allocation0 [shape = 's32[1]{0}', space=sflag, size = 0x4, scoped, tag = 'scoped memory for custom-call.1']
    %3 = vsyncpa [#allocation0], 0
    %s4 = sshll.u32 %s1, 4
    %s5 = int_to_ptr.vmem [resolvable:$true] %s4
    %7 = dma.hbm_to_vmem [thread:$0]  %s2, 256, %s5, [#allocation0]
    %8 = dma.done [#allocation0], 256
    %9 = vsyncpa [#allocation0], 1

// kernel: complex_layer_norm.1
$region0: #{complex_layer_norm.1}
  #allocation0 [shape = 'u32[]', space=smem, size = 0x4, offset = 0x4, fixed_abs, tag = 'smem constant byte address 0x4 - core index']
  #allocation1 [shape = 'u32[144,128]{1,0:T(1,128)}', space=vmem, size = 0x12000, scoped, tag = 'internal scratch']
  %s0 = inlined_call_operand.vmem [shape: f32[16,128], index: 0, kind: input, shape index: {}]
  %s1 = inlined_call_operand.vmem [shape: f32[16,128], index: 1, kind: input, shape index: {}]
  %s2 = inlined_call_operand.vmem [shape: f32[16,128], index: 2, kind: output, shape index: {0}]
  %s3 = inlined_call_operand.vmem [shape: f32[16,128], index: 3, kind: output, shape index: {1}]
  %4 = xla_tuple %s2, %s3
  %s5 = sld [smem:[#allocation0]]
  $region26: #{complex_layer_norm.1} parent=0
    _
  %s7 = ssub.s32 1, %s5
  %s8 = scalar_select 0, %s7, %s5
  // Predicated region
  $region2: #{complex_layer_norm.1} parent=0 // pred_check
    _
  $region3: #{complex_layer_norm.1} parent=0 // pred_check_branch
    %10 = sbr.rel (0) target = $region5
  $region4: #{complex_layer_norm.1} parent=0 // pred_region
    _
  $region5: #{complex_layer_norm.1} parent=0 // pred_fallthru
    _
  // Predicated region
  $region6: #{complex_layer_norm.1} parent=0 // pred_check
    _
  $region7: #{complex_layer_norm.1} parent=0 // pred_check_branch
    %12 = sbr.rel (0) target = $region9
  $region8: #{complex_layer_norm.1} parent=0 // pred_region
    _
  $region9: #{complex_layer_norm.1} parent=0 // pred_fallthru
    _
  %v13 = vld [vmem:[%s0] sm:$0xff]
  %v14 = vld [vmem:[%s0 + $0x8] sm:$0xff]
  %v15 = vld [vmem:[%s1] sm:$0xff]
  %v16 = vld [vmem:[%s1 + $0x8] sm:$0xff]
  %17 = vadd.xlane.f32.xlu0 %v13
  %v18 = vpop.xlane.xlu0 %17
  %19 = vadd.xlane.f32.xlu0 %v14
  %v20 = vpop.xlane.xlu0 %19
  %21 = vadd.xlane.f32.xlu0 %v15
  %v22 = vpop.xlane.xlu0 %21
  %23 = vadd.xlane.f32.xlu0 %v16
  %v24 = vpop.xlane.xlu0 %23
  %v25 = vmul.f32 %v13, %v13
  %v26 = vmul.f32 %v14, %v14
  %v27 = vmul.f32 %v15, %v15
  %v28 = vmul.f32 %v16, %v16
  %v29 = vadd.f32 %v25, %v27
  %v30 = vadd.f32 %v26, %v28
  %31 = vadd.xlane.f32.xlu0 %v29
  %v32 = vpop.xlane.xlu0 %31
  %33 = vadd.xlane.f32.xlu0 %v30
  %v34 = vpop.xlane.xlu0 %33
  %v35 = vmul.f32 %v18, 0.0078125
  %v36 = vmul.f32 %v20, 0.0078125
  %v37 = vmul.f32 %v22, 0.0078125
  %v38 = vmul.f32 %v24, 0.0078125
  %v39 = vmul.f32 %v32, 0.0078125
  %v40 = vmul.f32 %v34, 0.0078125
  %v41 = vmul.f32 %v35, %v35
  %v42 = vmul.f32 %v36, %v36
  %v43 = vmul.f32 %v37, %v37
  %v44 = vmul.f32 %v38, %v38
  %v45 = vadd.f32 %v41, %v43
  %v46 = vadd.f32 %v42, %v44
  %v47 = vsub.f32 %v39, %v45
  %v48 = vsub.f32 %v40, %v46
  %v49 = vmax.f32 %v47, 0.0
  %v50 = vmax.f32 %v48, 0.0
  %v51 = vadd.f32 %v49, 1e-05
  %v52 = vadd.f32 %v50, 1e-05
  %v53 = vrsqrt.pop %v51
  %v54 = vrsqrt.pop %v52
  %v55 = vsub.f32 %v13, %v35
  %v56 = vsub.f32 %v14, %v36
  %v57 = vmul.f32 %v55, %v53
  %v58 = vmul.f32 %v56, %v54
  %59 = vst [vmem:[%s2] sm:$0xff] %v57
  %60 = vst [vmem:[%s2 + $0x8] sm:$0xff] %v58
  %v61 = vsub.f32 %v15, %v37
  %v62 = vsub.f32 %v16, %v38
  %v63 = vmul.f32 %v61, %v53
  %v64 = vmul.f32 %v62, %v54
  %65 = vst [vmem:[%s3] sm:$0xff] %v63
  %66 = vst [vmem:[%s3 + $0x8] sm:$0xff] %v64
  // Predicated region
  $region10: #{complex_layer_norm.1} parent=0 // pred_check
    _
  $region11: #{complex_layer_norm.1} parent=0 // pred_check_branch
    %68 = sbr.rel (0) target = $region13
  $region12: #{complex_layer_norm.1} parent=0 // pred_region
    _
  $region13: #{complex_layer_norm.1} parent=0 // pred_fallthru
    _
  // Predicated region
  $region14: #{complex_layer_norm.1} parent=0 // pred_check
    _
  $region15: #{complex_layer_norm.1} parent=0 // pred_check_branch
    %70 = sbr.rel (0) target = $region17
  $region16: #{complex_layer_norm.1} parent=0 // pred_region
    _
  $region17: #{complex_layer_norm.1} parent=0 // pred_fallthru
    _
  // Predicated region
  $region18: #{complex_layer_norm.1} parent=0 // pred_check
    _
  $region19: #{complex_layer_norm.1} parent=0 // pred_check_branch
    %72 = sbr.rel (0) target = $region21
  $region20: #{complex_layer_norm.1} parent=0 // pred_region
    _
  $region21: #{complex_layer_norm.1} parent=0 // pred_fallthru
    _
  // Predicated region
  $region22: #{complex_layer_norm.1} parent=0 // pred_check
    _
  $region23: #{complex_layer_norm.1} parent=0 // pred_check_branch
    %74 = sbr.rel (0) target = $region25
  $region24: #{complex_layer_norm.1} parent=0 // pred_region
    _
  $region25: #{complex_layer_norm.1} parent=0 // pred_fallthru
    _

</llo_original>
